<compile_context>
chip_gen: v6e
topology: v6e:2x2x1
jax: 0.10.0
libtpu: 0.0.40
codegen_flags: <defaults>
</compile_context>

<pallas_src>
import functools

import jax
import jax.numpy as jnp
from jax import lax
from jax.experimental import pallas as pl
from jax.experimental.pallas import tpu as pltpu


def _knn_kernel(x_ref, y_ref, idx_ref, *, k, dilation):
    # x_ref  : (1, TM, C)  queries (un-normalized: row scale preserves argmax)
    # y_ref  : (1, C, Ny)  keys, native channel-major layout
    # idx_ref: (1, k, TM)  lane-dense output (one selection per sublane row)
    x = x_ref[0]                                    # (TM, C)
    y = y_ref[0]                                    # (C, Ny)
    eps = jnp.float32(1e-12)

    # F.normalize(p=2, dim=channel) on y only; reduce over the sublane (C)
    # axis keeps all 128 lanes (the N axis) busy.
    y_norm = jnp.maximum(jnp.sqrt(jnp.sum(y * y, axis=0, keepdims=True)), eps)
    yn = y / y_norm                                 # (C, Ny)

    # scores[m, n] = x[m] . yn[n]; larger score == nearer neighbor.
    # Canonical (M,K) x (K,N) MXU matmul -- no transposes anywhere.
    scores = jnp.dot(x, yn, preferred_element_type=jnp.float32)   # (TM, Ny)

    tm, ny = scores.shape
    col = lax.broadcasted_iota(jnp.int32, (tm, ny), 1)
    neg_inf = jnp.float32(-jnp.inf)

    # Iterative nearest-first selection with first-occurrence tie-breaking
    # (matches topk(-dist) ordering).  Dilation applied in-kernel: only every
    # `dilation`-th selection is stored, and we stop after the last needed one.
    n_steps = (k - 1) * dilation + 1
    neg = scores
    for step in range(n_steps):
        m = jnp.max(neg, axis=-1, keepdims=True)                   # (TM, 1)
        cand = jnp.where(neg == m, col, jnp.int32(ny))
        sel = jnp.min(cand, axis=-1)                                # (TM,) int32
        if step % dilation == 0:
            idx_ref[0, step // dilation, :] = sel
        if step + 1 < n_steps:
            neg = jnp.where(col == sel[:, None], neg_inf, neg)


def _pick_query_tile(nx, ny):
    # Largest lane-aligned query tile that divides Nx while keeping the
    # (TM, Ny) f32 score working set <= ~8 MiB; fall back to full Nx.
    score_budget = 8 * 1024 * 1024
    for tm in (1024, 512, 256, 128):
        if nx % tm == 0 and tm * ny * 4 <= score_budget:
            return tm
    for tm in (128, 64, 32, 16, 8):
        if nx % tm == 0:
            return tm
    return nx


def dense_dilated_knn_graph(x, y, k, dilation):
    """x, y: (B, C, N, 1) float.  Returns (0, edge_index) with
    edge_index: (2, B, Nx, k) int32 -- [nn_idx, center_idx] after dilation."""
    B, C, Nx, _ = x.shape
    Ny = y.shape[2]

    # Drop the trailing W=1 axis.  y keeps native channel-major layout;
    # x becomes (B, Nx, C) so the kernel's matmul lhs is (M, K).
    xp = jnp.transpose(x[..., 0], (0, 2, 1)).astype(jnp.float32)   # (B, Nx, C)
    yp = y[..., 0].astype(jnp.float32)                             # (B, C, Ny)

    TM = _pick_query_tile(Nx, Ny)
    grid = (B, Nx // TM)

    # VMEM budget: double-buffered x/out tiles, double-buffered resident y
    # tile, (TM, Ny) score working set (+ masking temp).  Stay well under
    # v7x's 64 MiB physical VMEM.
    block_bytes = 4 * (2 * TM * C + 2 * C * Ny + 2 * k * TM + 2 * TM * Ny)
    vmem_limit = int(min(max(2 * block_bytes, 32 * 1024 * 1024),
                         48 * 1024 * 1024))

    nn_idx_t = pl.pallas_call(
        functools.partial(_knn_kernel, k=k, dilation=dilation),
        out_shape=jax.ShapeDtypeStruct((B, k, Nx), jnp.int32),
        grid=grid,
        in_specs=[
            pl.BlockSpec((1, TM, C), lambda b, i: (b, i, 0)),
            pl.BlockSpec((1, C, Ny), lambda b, i: (b, 0, 0)),  # resident over i
        ],
        out_specs=pl.BlockSpec((1, k, TM), lambda b, i: (b, 0, i)),
        compiler_params=pltpu.CompilerParams(
            dimension_semantics=("parallel", "parallel"),
            vmem_limit_bytes=vmem_limit,
        ),
    )(xp, yp)

    nn_idx = jnp.transpose(nn_idx_t, (0, 2, 1))                    # (B, Nx, k)
    center_idx = jnp.broadcast_to(
        jnp.arange(Nx, dtype=jnp.int32)[None, :, None], (B, Nx, k))
    edge_index = jnp.stack((nn_idx, center_idx), axis=0)           # (2, B, Nx, k)
    return (0, edge_index)


if __name__ == "__main__":
    key = jax.random.PRNGKey(0)
    kx, ky = jax.random.split(key)
    B, C, N = 2, 4, 16
    k, dilation = 4, 2   # module hyper-params (no learnable weights)

    x = jax.random.normal(kx, (B, C, N, 1), dtype=jnp.float32)
    y = jax.random.normal(ky, (B, C, N, 1), dtype=jnp.float32)

    zero, edge_index = dense_dilated_knn_graph(x, y, k, dilation)
    edge_index = jax.block_until_ready(edge_index)
    assert zero == 0
    assert edge_index.shape == (2, B, N, k)

    # Pure-JAX reference of the PyTorch module (normalize both, full dist, topk).
    def _ref(x, y, k, dilation):
        xn = x / jnp.maximum(jnp.linalg.norm(x, axis=1, keepdims=True), 1e-12)
        yn = y / jnp.maximum(jnp.linalg.norm(y, axis=1, keepdims=True), 1e-12)
        xp = jnp.transpose(xn[..., 0], (0, 2, 1))
        yp = jnp.transpose(yn[..., 0], (0, 2, 1))
        inner = -2.0 * jnp.einsum("bnc,bmc->bnm", xp, yp)
        xs = jnp.sum(xp * xp, axis=-1, keepdims=True)
        ys = jnp.sum(yp * yp, axis=-1, keepdims=True)
        dist = xs + inner + jnp.swapaxes(ys, 1, 2)
        _, nn_idx = lax.top_k(-dist, k * dilation)
        return nn_idx[..., ::dilation].astype(jnp.int32)

    ref_nn = _ref(x, y, k, dilation)
    assert jnp.array_equal(edge_index[0], ref_nn), "nn indices mismatch"
    assert jnp.array_equal(
        edge_index[1],
        jnp.broadcast_to(jnp.arange(N, dtype=jnp.int32)[None, :, None], (B, N, k)))
    print("KERNEL_OK")
</pallas_src>

<mosaic_0001>
module attributes {stable_mosaic.version = 11 : i64} {
  func.func @_knn_kernel(%arg0: i32, %arg1: i32, %arg2: memref<1x16x4xf32, #tpu.memory_space<vmem>>, %arg3: memref<1x4x16xf32, #tpu.memory_space<vmem>>, %arg4: memref<1x4x16xi32, #tpu.memory_space<vmem>>) attributes {dimension_semantics = [#tpu.dimension_semantics<parallel>, #tpu.dimension_semantics<parallel>], iteration_bounds = array<i64: 2, 1>, scalar_prefetch = 0 : i64, scratch_operands = 0 : i64, tpu.core_type = #tpu.core_type<tc>, window_params = [{transform_indices = @transform_0, window_bounds = array<i64: 1, 16, 4>}, {transform_indices = @transform_1, window_bounds = array<i64: 1, 4, 16>}, {transform_indices = @transform_2, window_bounds = array<i64: 1, 4, 16>}]} {
    %c0 = arith.constant 0 : index
    %c0_0 = arith.constant 0 : index
    %c0_1 = arith.constant 0 : index
    %0 = vector.load %arg2[%c0, %c0_0, %c0_1] : memref<1x16x4xf32, #tpu.memory_space<vmem>>, vector<1x16x4xf32>
    %1 = vector.shape_cast %0 : vector<1x16x4xf32> to vector<16x4xf32>
    %c0_2 = arith.constant 0 : index
    %c0_3 = arith.constant 0 : index
    %c0_4 = arith.constant 0 : index
    %2 = vector.load %arg3[%c0_2, %c0_3, %c0_4] : memref<1x4x16xf32, #tpu.memory_space<vmem>>, vector<1x4x16xf32>
    %3 = vector.shape_cast %2 : vector<1x4x16xf32> to vector<4x16xf32>
    %4 = arith.mulf %3, %3 : vector<4x16xf32>
    %cst = arith.constant dense<0.000000e+00> : vector<16xf32>
    %5 = vector.multi_reduction <add>, %4, %cst [0] : vector<4x16xf32> to vector<16xf32>
    %6 = vector.shape_cast %5 : vector<16xf32> to vector<1x16xf32>
    %7 = math.sqrt %6 : vector<1x16xf32>
    %cst_5 = arith.constant 9.99999996E-13 : f32
    %8 = vector.broadcast %cst_5 : f32 to vector<1x16xf32>
    %9 = arith.maximumf %7, %8 : vector<1x16xf32>
    %10 = vector.broadcast %9 : vector<1x16xf32> to vector<4x16xf32>
    %11 = arith.divf %3, %10 : vector<4x16xf32>
    %cst_6 = arith.constant dense<0.000000e+00> : vector<16x16xf32>
    %12 = tpu.matmul %1, %11, %cst_6 {dimension_numbers = #tpu.dot_dimension_numbers<[1], [0], [0], [1], [0, 0, 1, 1], [], []>} : vector<16x4xf32>, vector<4x16xf32>, vector<16x16xf32> -> vector<16x16xf32>
    %13 = tpu.iota {dimensions = array<i32: 1>} : vector<16x16xi32>
    %cst_7 = arith.constant dense<0xFF800000> : vector<16xf32>
    %14 = vector.multi_reduction <maximumf>, %12, %cst_7 [1] : vector<16x16xf32> to vector<16xf32>
    %15 = vector.shape_cast %14 : vector<16xf32> to vector<16x1xf32>
    %16 = vector.broadcast %15 : vector<16x1xf32> to vector<16x16xf32>
    %17 = arith.cmpf oeq, %12, %16 : vector<16x16xf32>
    %c16_i32 = arith.constant 16 : i32
    %18 = vector.broadcast %c16_i32 : i32 to vector<16x16xi32>
    %19 = arith.select %17, %13, %18 : vector<16x16xi1>, vector<16x16xi32>
    %cst_8 = arith.constant dense<2147483647> : vector<16xi32>
    %20 = vector.multi_reduction <minsi>, %19, %cst_8 [1] : vector<16x16xi32> to vector<16xi32>
    %c0_9 = arith.constant 0 : index
    %c0_10 = arith.constant 0 : index
    %c0_11 = arith.constant 0 : index
    %21 = vector.load %arg4[%c0_9, %c0_10, %c0_11] : memref<1x4x16xi32, #tpu.memory_space<vmem>>, vector<1x1x16xi32>
    %22 = vector.shape_cast %21 : vector<1x1x16xi32> to vector<16xi32>
    %23 = vector.shape_cast %20 : vector<16xi32> to vector<1x1x16xi32>
    tpu.vector_store %arg4[%c0_9, %c0_10, %c0_11], %23 {strides = array<i32>} : memref<1x4x16xi32, #tpu.memory_space<vmem>>, vector<1x1x16xi32>,
    %24 = vector.shape_cast %20 : vector<16xi32> to vector<16x1xi32>
    %25 = vector.broadcast %24 : vector<16x1xi32> to vector<16x16xi32>
    %26 = arith.cmpi eq, %13, %25 : vector<16x16xi32>
    %cst_12 = arith.constant 0xFF800000 : f32
    %27 = vector.broadcast %cst_12 : f32 to vector<16x16xf32>
    %28 = arith.select %26, %27, %12 : vector<16x16xi1>, vector<16x16xf32>
    %cst_13 = arith.constant dense<0xFF800000> : vector<16xf32>
    %29 = vector.multi_reduction <maximumf>, %28, %cst_13 [1] : vector<16x16xf32> to vector<16xf32>
    %30 = vector.shape_cast %29 : vector<16xf32> to vector<16x1xf32>
    %31 = vector.broadcast %30 : vector<16x1xf32> to vector<16x16xf32>
    %32 = arith.cmpf oeq, %28, %31 : vector<16x16xf32>
    %c16_i32_14 = arith.constant 16 : i32
    %33 = vector.broadcast %c16_i32_14 : i32 to vector<16x16xi32>
    %34 = arith.select %32, %13, %33 : vector<16x16xi1>, vector<16x16xi32>
    %cst_15 = arith.constant dense<2147483647> : vector<16xi32>
    %35 = vector.multi_reduction <minsi>, %34, %cst_15 [1] : vector<16x16xi32> to vector<16xi32>
    %36 = vector.shape_cast %35 : vector<16xi32> to vector<16x1xi32>
    %37 = vector.broadcast %36 : vector<16x1xi32> to vector<16x16xi32>
    %38 = arith.cmpi eq, %13, %37 : vector<16x16xi32>
    %cst_16 = arith.constant 0xFF800000 : f32
    %39 = vector.broadcast %cst_16 : f32 to vector<16x16xf32>
    %40 = arith.select %38, %39, %28 : vector<16x16xi1>, vector<16x16xf32>
    %cst_17 = arith.constant dense<0xFF800000> : vector<16xf32>
    %41 = vector.multi_reduction <maximumf>, %40, %cst_17 [1] : vector<16x16xf32> to vector<16xf32>
    %42 = vector.shape_cast %41 : vector<16xf32> to vector<16x1xf32>
    %43 = vector.broadcast %42 : vector<16x1xf32> to vector<16x16xf32>
    %44 = arith.cmpf oeq, %40, %43 : vector<16x16xf32>
    %c16_i32_18 = arith.constant 16 : i32
    %45 = vector.broadcast %c16_i32_18 : i32 to vector<16x16xi32>
    %46 = arith.select %44, %13, %45 : vector<16x16xi1>, vector<16x16xi32>
    %cst_19 = arith.constant dense<2147483647> : vector<16xi32>
    %47 = vector.multi_reduction <minsi>, %46, %cst_19 [1] : vector<16x16xi32> to vector<16xi32>
    %c0_20 = arith.constant 0 : index
    %c1 = arith.constant 1 : index
    %c0_21 = arith.constant 0 : index
    %48 = vector.load %arg4[%c0_20, %c1, %c0_21] : memref<1x4x16xi32, #tpu.memory_space<vmem>>, vector<1x1x16xi32>
    %49 = vector.shape_cast %48 : vector<1x1x16xi32> to vector<16xi32>
    %50 = vector.shape_cast %47 : vector<16xi32> to vector<1x1x16xi32>
    tpu.vector_store %arg4[%c0_20, %c1, %c0_21], %50 {strides = array<i32>} : memref<1x4x16xi32, #tpu.memory_space<vmem>>, vector<1x1x16xi32>,
    %51 = vector.shape_cast %47 : vector<16xi32> to vector<16x1xi32>
    %52 = vector.broadcast %51 : vector<16x1xi32> to vector<16x16xi32>
    %53 = arith.cmpi eq, %13, %52 : vector<16x16xi32>
    %cst_22 = arith.constant 0xFF800000 : f32
    %54 = vector.broadcast %cst_22 : f32 to vector<16x16xf32>
    %55 = arith.select %53, %54, %40 : vector<16x16xi1>, vector<16x16xf32>
    %cst_23 = arith.constant dense<0xFF800000> : vector<16xf32>
    %56 = vector.multi_reduction <maximumf>, %55, %cst_23 [1] : vector<16x16xf32> to vector<16xf32>
    %57 = vector.shape_cast %56 : vector<16xf32> to vector<16x1xf32>
    %58 = vector.broadcast %57 : vector<16x1xf32> to vector<16x16xf32>
    %59 = arith.cmpf oeq, %55, %58 : vector<16x16xf32>
    %c16_i32_24 = arith.constant 16 : i32
    %60 = vector.broadcast %c16_i32_24 : i32 to vector<16x16xi32>
    %61 = arith.select %59, %13, %60 : vector<16x16xi1>, vector<16x16xi32>
    %cst_25 = arith.constant dense<2147483647> : vector<16xi32>
    %62 = vector.multi_reduction <minsi>, %61, %cst_25 [1] : vector<16x16xi32> to vector<16xi32>
    %63 = vector.shape_cast %62 : vector<16xi32> to vector<16x1xi32>
    %64 = vector.broadcast %63 : vector<16x1xi32> to vector<16x16xi32>
    %65 = arith.cmpi eq, %13, %64 : vector<16x16xi32>
    %cst_26 = arith.constant 0xFF800000 : f32
    %66 = vector.broadcast %cst_26 : f32 to vector<16x16xf32>
    %67 = arith.select %65, %66, %55 : vector<16x16xi1>, vector<16x16xf32>
    %cst_27 = arith.constant dense<0xFF800000> : vector<16xf32>
    %68 = vector.multi_reduction <maximumf>, %67, %cst_27 [1] : vector<16x16xf32> to vector<16xf32>
    %69 = vector.shape_cast %68 : vector<16xf32> to vector<16x1xf32>
    %70 = vector.broadcast %69 : vector<16x1xf32> to vector<16x16xf32>
    %71 = arith.cmpf oeq, %67, %70 : vector<16x16xf32>
    %c16_i32_28 = arith.constant 16 : i32
    %72 = vector.broadcast %c16_i32_28 : i32 to vector<16x16xi32>
    %73 = arith.select %71, %13, %72 : vector<16x16xi1>, vector<16x16xi32>
    %cst_29 = arith.constant dense<2147483647> : vector<16xi32>
    %74 = vector.multi_reduction <minsi>, %73, %cst_29 [1] : vector<16x16xi32> to vector<16xi32>
    %c0_30 = arith.constant 0 : index
    %c2 = arith.constant 2 : index
    %c0_31 = arith.constant 0 : index
    %75 = vector.load %arg4[%c0_30, %c2, %c0_31] : memref<1x4x16xi32, #tpu.memory_space<vmem>>, vector<1x1x16xi32>
    %76 = vector.shape_cast %75 : vector<1x1x16xi32> to vector<16xi32>
    %77 = vector.shape_cast %74 : vector<16xi32> to vector<1x1x16xi32>
    tpu.vector_store %arg4[%c0_30, %c2, %c0_31], %77 {strides = array<i32>} : memref<1x4x16xi32, #tpu.memory_space<vmem>>, vector<1x1x16xi32>,
    %78 = vector.shape_cast %74 : vector<16xi32> to vector<16x1xi32>
    %79 = vector.broadcast %78 : vector<16x1xi32> to vector<16x16xi32>
    %80 = arith.cmpi eq, %13, %79 : vector<16x16xi32>
    %cst_32 = arith.constant 0xFF800000 : f32
    %81 = vector.broadcast %cst_32 : f32 to vector<16x16xf32>
    %82 = arith.select %80, %81, %67 : vector<16x16xi1>, vector<16x16xf32>
    %cst_33 = arith.constant dense<0xFF800000> : vector<16xf32>
    %83 = vector.multi_reduction <maximumf>, %82, %cst_33 [1] : vector<16x16xf32> to vector<16xf32>
    %84 = vector.shape_cast %83 : vector<16xf32> to vector<16x1xf32>
    %85 = vector.broadcast %84 : vector<16x1xf32> to vector<16x16xf32>
    %86 = arith.cmpf oeq, %82, %85 : vector<16x16xf32>
    %c16_i32_34 = arith.constant 16 : i32
    %87 = vector.broadcast %c16_i32_34 : i32 to vector<16x16xi32>
    %88 = arith.select %86, %13, %87 : vector<16x16xi1>, vector<16x16xi32>
    %cst_35 = arith.constant dense<2147483647> : vector<16xi32>
    %89 = vector.multi_reduction <minsi>, %88, %cst_35 [1] : vector<16x16xi32> to vector<16xi32>
    %90 = vector.shape_cast %89 : vector<16xi32> to vector<16x1xi32>
    %91 = vector.broadcast %90 : vector<16x1xi32> to vector<16x16xi32>
    %92 = arith.cmpi eq, %13, %91 : vector<16x16xi32>
    %cst_36 = arith.constant 0xFF800000 : f32
    %93 = vector.broadcast %cst_36 : f32 to vector<16x16xf32>
    %94 = arith.select %92, %93, %82 : vector<16x16xi1>, vector<16x16xf32>
    %cst_37 = arith.constant dense<0xFF800000> : vector<16xf32>
    %95 = vector.multi_reduction <maximumf>, %94, %cst_37 [1] : vector<16x16xf32> to vector<16xf32>
    %96 = vector.shape_cast %95 : vector<16xf32> to vector<16x1xf32>
    %97 = vector.broadcast %96 : vector<16x1xf32> to vector<16x16xf32>
    %98 = arith.cmpf oeq, %94, %97 : vector<16x16xf32>
    %c16_i32_38 = arith.constant 16 : i32
    %99 = vector.broadcast %c16_i32_38 : i32 to vector<16x16xi32>
    %100 = arith.select %98, %13, %99 : vector<16x16xi1>, vector<16x16xi32>
    %cst_39 = arith.constant dense<2147483647> : vector<16xi32>
    %101 = vector.multi_reduction <minsi>, %100, %cst_39 [1] : vector<16x16xi32> to vector<16xi32>
    %c0_40 = arith.constant 0 : index
    %c3 = arith.constant 3 : index
    %c0_41 = arith.constant 0 : index
    %102 = vector.load %arg4[%c0_40, %c3, %c0_41] : memref<1x4x16xi32, #tpu.memory_space<vmem>>, vector<1x1x16xi32>
    %103 = vector.shape_cast %102 : vector<1x1x16xi32> to vector<16xi32>
    %104 = vector.shape_cast %101 : vector<16xi32> to vector<1x1x16xi32>
    tpu.vector_store %arg4[%c0_40, %c3, %c0_41], %104 {strides = array<i32>} : memref<1x4x16xi32, #tpu.memory_space<vmem>>, vector<1x1x16xi32>,
    return
  }
  func.func @transform_0(%arg0: i32, %arg1: i32) -> (i32, i32, i32) {
    %c0_i32 = arith.constant 0 : i32
    %c0_i32_0 = arith.constant 0 : i32
    return %arg0, %arg1, %c0_i32 : i32, i32, i32
  }
  func.func @transform_1(%arg0: i32, %arg1: i32) -> (i32, i32, i32) {
    %c0_i32 = arith.constant 0 : i32
    %c0_i32_0 = arith.constant 0 : i32
    %c0_i32_1 = arith.constant 0 : i32
    return %arg0, %c0_i32, %c0_i32_0 : i32, i32, i32
  }
  func.func @transform_2(%arg0: i32, %arg1: i32) -> (i32, i32, i32) {
    %c0_i32 = arith.constant 0 : i32
    %c0_i32_0 = arith.constant 0 : i32
    return %arg0, %c0_i32, %arg1 : i32, i32, i32
  }
}

</mosaic_0001>

<llo_original>
// kernel: tpu_custom_call.1
$region0: #{tpu_custom_call.1}
  #allocation0 [shape = 'u32[]', space=smem, size = 0x4, offset = 0x4, fixed_abs, tag = 'smem constant byte address 0x4 - core index']
  #allocation1 [shape = 'u32[144,128]{1,0:T(1,128)}', space=vmem, size = 0x12000, scoped, tag = 'internal scratch']
  %s0 = inlined_call_operand.vmem [shape: f32[2,16,4], index: 0, kind: input, shape index: {}]
  %s1 = inlined_call_operand.vmem [shape: f32[2,4,16], index: 1, kind: input, shape index: {}]
  %s2 = inlined_call_operand.hbm [shape: s32[2,4,16], index: 2, kind: output, shape index: {}]
  %s3 = sld [smem:[#allocation0]]
  $region41: #{tpu_custom_call.1} parent=0
    _
  %s5 = ssub.s32 1, %s3
  %s6 = scalar_select 0, %s5, %s3
  $region1: #{tpu_custom_call.1} parent=0
    #allocation2 [shape = 'u8[4096]{0}', space=vmem, size = 0x1000, scoped, tag = 'output window, operand 0']
    #allocation3 [shape = 's32[2]{0}', space=sflag, size = 0x8, scoped, tag = 'scoped memory for tpu_custom_call.1']
    %7 = vsyncpa [#allocation3], 0
    %s8 = scalar_lea.sflag [#allocation3], 1
    %9 = vsyncpa %s8, 0
    loop: start=0, step=1, limit=4
    $region2: #{tpu_custom_call.1} parent=1 // loop_pre_header
      _
    $region3: #{tpu_custom_call.1} parent=1 // loop_header
      %s11 = sphi 0, %s15
      %p12 = scmp.ge.s32.totalorder %s11, 4
      %s18 = sphi 0, %s30
      %s19 = sphi 0, %s26
      %s20 = sphi 0, %s18
      %s21 = sphi 0, %s19
      %s22 = sphi 0, %s20
      %s23 = sphi 0, %s21
      %s35 = sphi 0, %s37
      %s38 = sphi 0, %s35
      %s39 = sphi 0, %s38
      %s55 = sphi 0, %s39
      %s61 = sphi 0, %s63
      %s64 = sphi 0, %s61
      %s65 = sphi 0, %s64
      %s81 = sphi 0, %s65
      %s89 = sphi 0, %s91
      %s92 = sphi 0, %s89
      %s93 = sphi 0, %s92
      %s109 = sphi 0, %s93
    $region4: #{tpu_custom_call.1} parent=1 // loop_header_branch
      %14 = sbr.rel (%p12) target = $region8
    $region5: #{tpu_custom_call.1} parent=1 // loop_body
      %s16 = ssub.s32 %s11, 1
      %s17 = ssub.s32 %s11, 2
      %s24 = sadd.s32 1, %s19
      %p25 = scmp.ge.s32.totalorder %s24, 1
      %s26 = scalar_select %p25, 0, %s24
      %s27 = sadd.s32 1, %s18
      %s28 = scalar_select %p25, %s27, %s18
      %p29 = scmp.ge.s32.totalorder %s28, 2
      %s30 = scalar_select %p29, 0, %s28
      %s31 = ssub.s32 %s18, %s30
      %s32 = ssub.s32 %s19, %s26
      %s33 = sor.u32 %s31, %s32
      %p34 = scmp.eq.s32.totalorder %s33, 0
      %s36 = sadd.s32 %s35, 1
      %s37 = scalar_select %p34, %s35, %s36
      %p40 = pneg %p34
      %p41 = scmp.eq.s32.totalorder %s11, 1
      %p42 = por %p40, %p41
      %p43 = scmp.ne.s32.totalorder %s35, %s38
      %p44 = scmp.eq.s32.totalorder %s11, 0
      %p45 = por %p43, %p44
      %p46 = scmp.ne.s32.totalorder %s35, %s38
      %p47 = scmp.eq.s32.totalorder %s16, 1
      %p48 = por %p46, %p47
      %p49 = scmp.ne.s32.totalorder %s38, %s39
      %p50 = scmp.eq.s32.totalorder %s16, 0
      %p51 = por %p49, %p50
      %p52 = scmp.ne.s32.totalorder %s38, %s39
      %p53 = scmp.eq.s32.totalorder %s17, 1
      %p54 = por %p52, %p53
      %p56 = scmp.ne.s32.totalorder %s39, %s55
      %p57 = scmp.eq.s32.totalorder %s17, 0
      %p58 = por %p56, %p57
      %s59 = ssub.s32 %s18, %s30
      %p60 = scmp.eq.s32.totalorder %s59, 0
      %s62 = sadd.s32 %s61, 1
      %s63 = scalar_select %p60, %s61, %s62
      %p66 = pneg %p60
      %p67 = scmp.eq.s32.totalorder %s11, 1
      %p68 = por %p66, %p67
      %p69 = scmp.ne.s32.totalorder %s61, %s64
      %p70 = scmp.eq.s32.totalorder %s11, 0
      %p71 = por %p69, %p70
      %p72 = scmp.ne.s32.totalorder %s61, %s64
      %p73 = scmp.eq.s32.totalorder %s16, 1
      %p74 = por %p72, %p73
      %p75 = scmp.ne.s32.totalorder %s64, %s65
      %p76 = scmp.eq.s32.totalorder %s16, 0
      %p77 = por %p75, %p76
      %p78 = scmp.ne.s32.totalorder %s64, %s65
      %p79 = scmp.eq.s32.totalorder %s17, 1
      %p80 = por %p78, %p79
      %p82 = scmp.ne.s32.totalorder %s65, %s81
      %p83 = scmp.eq.s32.totalorder %s17, 0
      %p84 = por %p82, %p83
      %s85 = ssub.s32 %s18, %s30
      %s86 = ssub.s32 %s19, %s26
      %s87 = sor.u32 %s85, %s86
      %p88 = scmp.eq.s32.totalorder %s87, 0
      %s90 = sadd.s32 %s89, 1
      %s91 = scalar_select %p88, %s89, %s90
      %p94 = pneg %p88
      %p95 = scmp.eq.s32.totalorder %s11, 1
      %p96 = por %p94, %p95
      %p97 = scmp.ne.s32.totalorder %s89, %s92
      %p98 = scmp.eq.s32.totalorder %s11, 0
      %p99 = por %p97, %p98
      %p100 = scmp.ne.s32.totalorder %s89, %s92
      %p101 = scmp.eq.s32.totalorder %s16, 1
      %p102 = por %p100, %p101
      %p103 = scmp.ne.s32.totalorder %s92, %s93
      %p104 = scmp.eq.s32.totalorder %s16, 0
      %p105 = por %p103, %p104
      %p106 = scmp.ne.s32.totalorder %s92, %s93
      %p107 = scmp.eq.s32.totalorder %s17, 1
      %p108 = por %p106, %p107
      %p110 = scmp.ne.s32.totalorder %s93, %s109
      %p111 = scmp.eq.s32.totalorder %s17, 0
      %p112 = por %p110, %p111
      %p113 = scmp.le.s32.totalorder 1, %s11
      %p114 = scmp.lt.s32.totalorder %s11, 3
      %p115 = pnand %p113, %p114
      %p116 = pneg %p115
      // Predicated region
      $region9: #{tpu_custom_call.1} parent=5 // pred_check
        _
      $region10: #{tpu_custom_call.1} parent=5 // pred_check_branch
        %118 = sbr.rel (%p115) target = $region12
      $region11: #{tpu_custom_call.1} parent=5 // pred_region
        %s119 = ssub.s32 %s11, 1
      $region12: #{tpu_custom_call.1} parent=5 // pred_fallthru
        _
      %p120 = scmp.lt.s32.totalorder %s11, 2
      // Predicated region
      $region13: #{tpu_custom_call.1} parent=5 // pred_check
        %p121 = pneg %p120
      $region14: #{tpu_custom_call.1} parent=5 // pred_check_branch
        %123 = sbr.rel (%p121) target = $region16
      $region15: #{tpu_custom_call.1} parent=5 // pred_region
        // Predicated region
        $region17: #{tpu_custom_call.1} parent=15 // pred_check
          %p124 = pneg %p45
        $region18: #{tpu_custom_call.1} parent=15 // pred_check_branch
          %126 = sbr.rel (%p124) target = $region20
        $region19: #{tpu_custom_call.1} parent=15 // pred_region
          %s127 = smul.u32 2, %s19
          %p128 = scmp.lt.s32.totalorder %s18, 1
          %s129 = scalar_select %p128, %s18, 1
          %p130 = scmp.lt.s32.totalorder %s127, 1
          %s131 = scalar_select %p130, %s127, 1
          %s132 = smul.addr %s129, 2
          %s133 = sadd.s32 %s131, %s132
          %s134 = smul.addr %s133, 8
          %s135 = scalar_lea.vmem %s0, %s134
          %s136 = smul.u32 2, %s19
        $region20: #{tpu_custom_call.1} parent=15 // pred_fallthru
          _
        // Predicated region
        $region21: #{tpu_custom_call.1} parent=15 // pred_check
          %p137 = pneg %p71
        $region22: #{tpu_custom_call.1} parent=15 // pred_check_branch
          %139 = sbr.rel (%p137) target = $region24
        $region23: #{tpu_custom_call.1} parent=15 // pred_region
          %p140 = scmp.lt.s32.totalorder %s18, 1
          %s141 = scalar_select %p140, %s18, 1
          %s142 = smul.addr %s141, 4
          %s143 = scalar_lea.vmem %s1, %s142
        $region24: #{tpu_custom_call.1} parent=15 // pred_fallthru
          _
      $region16: #{tpu_custom_call.1} parent=5 // pred_fallthru
        _
      %p144 = scmp.le.s32.totalorder 1, %s11
      %p145 = scmp.lt.s32.totalorder %s11, 3
      %p146 = pnand %p144, %p145
      %p147 = pneg %p146
      // Predicated region
      $region25: #{tpu_custom_call.1} parent=5 // pred_check
        _
      $region26: #{tpu_custom_call.1} parent=5 // pred_check_branch
        %149 = sbr.rel (%p146) target = $region28
      $region27: #{tpu_custom_call.1} parent=5 // pred_region
        %s150 = ssub.s32 %s11, 1
        %s151 = smul.u32 2, %s21
        %p152 = scmp.lt.s32.totalorder %s20, 1
        %s153 = scalar_select %p152, %s20, 1
        %p154 = scmp.lt.s32.totalorder %s151, 1
        %s155 = scalar_select %p154, %s151, 1
        %s156 = smul.addr %s153, 2
        %s157 = sadd.s32 %s155, %s156
        %s158 = smul.addr %s157, 8
        %s159 = scalar_lea.vmem %s0, %s158
        %p160 = pneg %p51
        %p161 = pneg %p48
        %p162 = scmp.lt.s32.totalorder %s20, 1
        %s163 = scalar_select %p162, %s20, 1
        %s164 = smul.addr %s163, 4
        %s165 = scalar_lea.vmem %s1, %s164
        %p166 = pneg %p77
        %p167 = pneg %p74
        %p168 = pneg %p105
        %p169 = pneg %p102
        %s170 = sand.u32 %s92, 1
        %s171 = scalar_lea.sflag [#allocation3], %s170
        %s172 = sand.u32 %s92, 1
        %s173 = smul.addr %s172, 4
        %s174 = scalar_lea.vmem [#allocation2], %s173
        %s175 = smul.u32 2, %s21
        %p176 = scmp.lt.s32.totalorder %s20, 1
        %s177 = scalar_select %p176, %s20, 1
        %p178 = scmp.lt.s32.totalorder %s175, 1
        %s179 = scalar_select %p178, %s175, 1
        %s180 = smul.addr %s177, 2
        %s181 = sadd.s32 %s179, %s180
        %s182 = smul.addr %s181, 8
        %s183 = scalar_lea.vmem %s0, %s182
        %s184 = smul.u32 2, %s21
        %p185 = scmp.lt.s32.totalorder %s20, 1
        %s186 = scalar_select %p185, %s20, 1
        %s187 = smul.addr %s186, 4
        %s188 = scalar_lea.vmem %s1, %s187
        %v189 = vld [vmem:[%s183] sm:$0xff]
        %v190 = vld [vmem:[%s183 + $0x8] sm:$0xff]
        %v191 = vld [vmem:[%s188] sm:$0xf]
        %v192 = vmul.f32 %v191, %v191
        %vm193 = vcmask 125952
        %v194 = vsel %vm193, %v192, 0.0
        %v195 = vrot.slane %v194, 4
        %v196 = vadd.f32 %v194, %v195
        %v197 = vrot.slane %v196, 2
        %v198 = vadd.f32 %v196, %v197
        %v199 = vrot.slane %v198, 1
        %v200 = vadd.f32 %v198, %v199
        %v201 = vrsqrt.pop %v200
        %v202 = vmul.f32 %v200, %v201
        %vm203 = vcmp.eq.f32.partialorder %v200, inf
        %v204 = vsel %vm203, %v200, %v202
        %vm205 = vcmp.eq.f32.partialorder %v200, 0.0
        %v206 = vand.u32 %v200, 2147483648
        %v207 = vsel %vm205, %v206, %v204
        %v208 = vmax.f32 %v207, 1e-12
        %v209 = vrcp.pop %v208
        %v210 = vmul.f32 %v191, %v209
        %vm211 = vcmask 31744
        %v213 = vsel %vm211, %v189, 0
        %v216 = vsel %vm211, %v190, 0
        %vm218 = vcmask 1043456
        %v220 = vsel %vm218, %v210, 0
        %222 = vmatprep.subr.mxu0 0.0
        %223 = vmatpush1.msra.mxu0 0.0
        %224 = vmatprep.subr.mxu0 0.0
        %225 = vmatpush1.msra.mxu0 0.0
        %226 = vmatprep.subr.mxu0 0.0
        %227 = vmatpush1.msra.mxu0 0.0
        %228 = vmatprep.subr.mxu0 0.0
        %229 = vmatpush1.msra.mxu0 0.0
        %230 = vmatprep.subr.mxu0 0.0
        %231 = vmatpush1.msra.mxu0 0.0
        %232 = vmatprep.subr.mxu0 0.0
        %233 = vmatpush1.msra.mxu0 0.0
        %234 = vmatprep.subr.mxu0 0.0
        %235 = vmatpush1.msra.mxu0 0.0
        %236 = vmatprep.subr.mxu0 0.0
        %237 = vmatpush1.msra.mxu0 0.0
        %238 = vmatprep.subr.mxu0 0.0
        %239 = vmatpush1.msra.mxu0 0.0
        %240 = vmatprep.subr.mxu0 0.0
        %241 = vmatpush1.msra.mxu0 0.0
        %242 = vmatprep.subr.mxu0 0.0
        %243 = vmatpush1.msra.mxu0 0.0
        %244 = vmatprep.subr.mxu0 0.0
        %245 = vmatpush1.msra.mxu0 0.0
        %246 = vmatprep.subr.mxu0 0.0
        %247 = vmatpush1.msra.mxu0 0.0
        %248 = vmatprep.subr.mxu0 0.0
        %249 = vmatpush1.msra.mxu0 0.0
        %250 = vmatprep.subr.mxu0 0.0
        %251 = vmatpush1.msra.mxu0 0.0
        %252 = vmatprep.subr.mxu0 0.0
        %253 = vmatpush1.msra.mxu0 %v220
        %254 = vmatprep.subr.mxu0 0.0
        %255 = vmatpush2.msra.mxu0 0.0
        %256 = vmatprep.subr.mxu0 0.0
        %257 = vmatpush2.msra.mxu0 0.0
        %258 = vmatprep.subr.mxu0 0.0
        %259 = vmatpush2.msra.mxu0 0.0
        %260 = vmatprep.subr.mxu0 0.0
        %261 = vmatpush2.msra.mxu0 0.0
        %262 = vmatprep.subr.mxu0 0.0
        %263 = vmatpush2.msra.mxu0 0.0
        %264 = vmatprep.subr.mxu0 0.0
        %265 = vmatpush2.msra.mxu0 0.0
        %266 = vmatprep.subr.mxu0 0.0
        %267 = vmatpush2.msra.mxu0 0.0
        %268 = vmatprep.subr.mxu0 0.0
        %269 = vmatpush2.msra.mxu0 0.0
        %270 = vmatprep.subr.mxu0 0.0
        %271 = vmatpush2.msra.mxu0 0.0
        %272 = vmatprep.subr.mxu0 0.0
        %273 = vmatpush2.msra.mxu0 0.0
        %274 = vmatprep.subr.mxu0 0.0
        %275 = vmatpush2.msra.mxu0 0.0
        %276 = vmatprep.subr.mxu0 0.0
        %277 = vmatpush2.msra.mxu0 0.0
        %278 = vmatprep.subr.mxu0 0.0
        %279 = vmatpush2.msra.mxu0 0.0
        %280 = vmatprep.subr.mxu0 0.0
        %281 = vmatpush2.msra.mxu0 0.0
        %282 = vmatprep.subr.mxu0 0.0
        %283 = vmatpush2.msra.mxu0 0.0
        %284 = vmatprep.subr.mxu0 0.0
        %285 = vmatpush2.msra.mxu0 0.0
        %286 = vmatprep.mubr.f32.mxu0 0.0
        %287 = vmatmul.mubr.f32.gmra.mxu0 %v213
        %v288 = vpop.f32.mrf.mxu0
        %v289 = vadd.f32 0.0, %v288
        %v290 = vpop.f32.mrf.mxu0
        %291 = vmatprep.mubr.f32.mxu0 0.0
        %292 = vmatmul.mubr.f32.gmra.mxu0 %v216
        %v293 = vpop.f32.mrf.mxu0
        %v294 = vadd.f32 0.0, %v293
        %v295 = vpop.f32.mrf.mxu0
        %296 = vdwg.mxu0
        %v297 = vlaneseq
        %v298 = vand.u32 %v297, 127
        %vm299 = vcmask 130048
        %v300 = vsel %vm299, %v289, -inf
        %301 = vmax.xlane.f32.xlu0 %v300
        %v302 = vpop.xlane.xlu0 %301
        %v303 = vsel %vm299, %v294, -inf
        %304 = vmax.xlane.f32.xlu0 %v303
        %v305 = vpop.xlane.xlu0 %304
        %vm306 = vcmp.eq.f32.partialorder %v289, %v302
        %vm307 = vcmp.eq.f32.partialorder %v294, %v305
        %v308 = vsel %vm306, %v298, 16
        %v309 = vsel %vm307, %v298, 16
        %v310 = vsel %vm299, %v308, 2147483647
        %v311 = vand.u32 %v310, 65535
        %v312 = vshra.s32 %v310, 16
        %v313 = vcvt.s32.f32 %v311
        %v314 = vcvt.s32.f32 %v312
        %315 = vmin.xlane.f32.xlu0 %v314
        %v316 = vpop.xlane.xlu0 %315
        %vm317 = vcmp.eq.f32.partialorder %v314, %v316
        %v318 = vsel %vm317, %v313, inf
        %319 = vmin.xlane.f32.xlu0 %v318
        %v320 = vpop.xlane.xlu0 %319
        %v321 = vcvt.f32.s32 %v320
        %v322 = vcvt.f32.s32 %v316
        %v323 = vshll.u32 %v322, 16
        %v324 = vadd.s32 %v323, %v321
        %v325 = vsel %vm299, %v309, 2147483647
        %v326 = vand.u32 %v325, 65535
        %v327 = vshra.s32 %v325, 16
        %v328 = vcvt.s32.f32 %v326
        %v329 = vcvt.s32.f32 %v327
        %330 = vmin.xlane.f32.xlu0 %v329
        %v331 = vpop.xlane.xlu0 %330
        %vm332 = vcmp.eq.f32.partialorder %v329, %v331
        %v333 = vsel %vm332, %v328, inf
        %334 = vmin.xlane.f32.xlu0 %v333
        %v335 = vpop.xlane.xlu0 %334
        %v336 = vcvt.f32.s32 %v335
        %v337 = vcvt.f32.s32 %v331
        %v338 = vshll.u32 %v337, 16
        %v339 = vadd.s32 %v338, %v336
        %v340 = vlaneseq
        %v341 = vshrl.u32 %v340, 7
        %v342 = vsub.s32 %v298, %v341
        %v343 = vrot.slane %v324, %v342
        %v344 = vadd.s32 %v298, 4294967288
        %v345 = vlaneseq
        %v346 = vshrl.u32 %v345, 7
        %v347 = vsub.s32 %v344, %v346
        %v348 = vrot.slane %v339, %v347
        %vm349 = vcmask 130112
        %v350 = vsel %vm349, %v348, %v343
        %vm351 = vcmask 122880
        %352 = vst.msk [vmem:[%s174] sm:$0x1] %vm351, %v350
        %vm353 = vcmp.eq.s32.totalorder %v298, %v324
        %vm354 = vcmp.eq.s32.totalorder %v298, %v339
        %v355 = vsel %vm353, -inf, %v289
        %v356 = vsel %vm354, -inf, %v294
        %v357 = vsel %vm299, %v355, -inf
        %358 = vmax.xlane.f32.xlu0 %v357
        %v359 = vpop.xlane.xlu0 %358
        %v360 = vsel %vm299, %v356, -inf
        %361 = vmax.xlane.f32.xlu0 %v360
        %v362 = vpop.xlane.xlu0 %361
        %vm363 = vcmp.eq.f32.partialorder %v355, %v359
        %vm364 = vcmp.eq.f32.partialorder %v356, %v362
        %v365 = vsel %vm363, %v298, 16
        %v366 = vsel %vm364, %v298, 16
        %v367 = vsel %vm299, %v365, 2147483647
        %v368 = vand.u32 %v367, 65535
        %v369 = vshra.s32 %v367, 16
        %v370 = vcvt.s32.f32 %v368
        %v371 = vcvt.s32.f32 %v369
        %372 = vmin.xlane.f32.xlu0 %v371
        %v373 = vpop.xlane.xlu0 %372
        %vm374 = vcmp.eq.f32.partialorder %v371, %v373
        %v375 = vsel %vm374, %v370, inf
        %376 = vmin.xlane.f32.xlu0 %v375
        %v377 = vpop.xlane.xlu0 %376
        %v378 = vcvt.f32.s32 %v377
        %v379 = vcvt.f32.s32 %v373
        %v380 = vshll.u32 %v379, 16
        %v381 = vadd.s32 %v380, %v378
        %v382 = vsel %vm299, %v366, 2147483647
        %v383 = vand.u32 %v382, 65535
        %v384 = vshra.s32 %v382, 16
        %v385 = vcvt.s32.f32 %v383
        %v386 = vcvt.s32.f32 %v384
        %387 = vmin.xlane.f32.xlu0 %v386
        %v388 = vpop.xlane.xlu0 %387
        %vm389 = vcmp.eq.f32.partialorder %v386, %v388
        %v390 = vsel %vm389, %v385, inf
        %391 = vmin.xlane.f32.xlu0 %v390
        %v392 = vpop.xlane.xlu0 %391
        %v393 = vcvt.f32.s32 %v392
        %v394 = vcvt.f32.s32 %v388
        %v395 = vshll.u32 %v394, 16
        %v396 = vadd.s32 %v395, %v393
        %vm397 = vcmp.eq.s32.totalorder %v298, %v381
        %vm398 = vcmp.eq.s32.totalorder %v298, %v396
        %v399 = vsel %vm397, -inf, %v355
        %v400 = vsel %vm398, -inf, %v356
        %v401 = vsel %vm299, %v399, -inf
        %402 = vmax.xlane.f32.xlu0 %v401
        %v403 = vpop.xlane.xlu0 %402
        %v404 = vsel %vm299, %v400, -inf
        %405 = vmax.xlane.f32.xlu0 %v404
        %v406 = vpop.xlane.xlu0 %405
        %vm407 = vcmp.eq.f32.partialorder %v399, %v403
        %vm408 = vcmp.eq.f32.partialorder %v400, %v406
        %v409 = vsel %vm407, %v298, 16
        %v410 = vsel %vm408, %v298, 16
        %v411 = vsel %vm299, %v409, 2147483647
        %v412 = vand.u32 %v411, 65535
        %v413 = vshra.s32 %v411, 16
        %v414 = vcvt.s32.f32 %v412
        %v415 = vcvt.s32.f32 %v413
        %416 = vmin.xlane.f32.xlu0 %v415
        %v417 = vpop.xlane.xlu0 %416
        %vm418 = vcmp.eq.f32.partialorder %v415, %v417
        %v419 = vsel %vm418, %v414, inf
        %420 = vmin.xlane.f32.xlu0 %v419
        %v421 = vpop.xlane.xlu0 %420
        %v422 = vcvt.f32.s32 %v421
        %v423 = vcvt.f32.s32 %v417
        %v424 = vshll.u32 %v423, 16
        %v425 = vadd.s32 %v424, %v422
        %v426 = vsel %vm299, %v410, 2147483647
        %v427 = vand.u32 %v426, 65535
        %v428 = vshra.s32 %v426, 16
        %v429 = vcvt.s32.f32 %v427
        %v430 = vcvt.s32.f32 %v428
        %431 = vmin.xlane.f32.xlu0 %v430
        %v432 = vpop.xlane.xlu0 %431
        %vm433 = vcmp.eq.f32.partialorder %v430, %v432
        %v434 = vsel %vm433, %v429, inf
        %435 = vmin.xlane.f32.xlu0 %v434
        %v436 = vpop.xlane.xlu0 %435
        %v437 = vcvt.f32.s32 %v436
        %v438 = vcvt.f32.s32 %v432
        %v439 = vshll.u32 %v438, 16
        %v440 = vadd.s32 %v439, %v437
        %v441 = vlaneseq
        %v442 = vshrl.u32 %v441, 7
        %v443 = vsub.s32 %v298, %v442
        %v444 = vrot.slane %v425, %v443
        %v445 = vlaneseq
        %v446 = vshrl.u32 %v445, 7
        %v447 = vsub.s32 %v344, %v446
        %v448 = vrot.slane %v440, %v447
        %v449 = vsel %vm349, %v448, %v444
        %450 = vst.msk [vmem:[%s174 + $0x1] sm:$0x1] %vm351, %v449
        %vm451 = vcmp.eq.s32.totalorder %v298, %v425
        %vm452 = vcmp.eq.s32.totalorder %v298, %v440
        %v453 = vsel %vm451, -inf, %v399
        %v454 = vsel %vm452, -inf, %v400
        %v455 = vsel %vm299, %v453, -inf
        %456 = vmax.xlane.f32.xlu0 %v455
        %v457 = vpop.xlane.xlu0 %456
        %v458 = vsel %vm299, %v454, -inf
        %459 = vmax.xlane.f32.xlu0 %v458
        %v460 = vpop.xlane.xlu0 %459
        %vm461 = vcmp.eq.f32.partialorder %v453, %v457
        %vm462 = vcmp.eq.f32.partialorder %v454, %v460
        %v463 = vsel %vm461, %v298, 16
        %v464 = vsel %vm462, %v298, 16
        %v465 = vsel %vm299, %v463, 2147483647
        %v466 = vand.u32 %v465, 65535
        %v467 = vshra.s32 %v465, 16
        %v468 = vcvt.s32.f32 %v466
        %v469 = vcvt.s32.f32 %v467
        %470 = vmin.xlane.f32.xlu0 %v469
        %v471 = vpop.xlane.xlu0 %470
        %vm472 = vcmp.eq.f32.partialorder %v469, %v471
        %v473 = vsel %vm472, %v468, inf
        %474 = vmin.xlane.f32.xlu0 %v473
        %v475 = vpop.xlane.xlu0 %474
        %v476 = vcvt.f32.s32 %v475
        %v477 = vcvt.f32.s32 %v471
        %v478 = vshll.u32 %v477, 16
        %v479 = vadd.s32 %v478, %v476
        %v480 = vsel %vm299, %v464, 2147483647
        %v481 = vand.u32 %v480, 65535
        %v482 = vshra.s32 %v480, 16
        %v483 = vcvt.s32.f32 %v481
        %v484 = vcvt.s32.f32 %v482
        %485 = vmin.xlane.f32.xlu0 %v484
        %v486 = vpop.xlane.xlu0 %485
        %vm487 = vcmp.eq.f32.partialorder %v484, %v486
        %v488 = vsel %vm487, %v483, inf
        %489 = vmin.xlane.f32.xlu0 %v488
        %v490 = vpop.xlane.xlu0 %489
        %v491 = vcvt.f32.s32 %v490
        %v492 = vcvt.f32.s32 %v486
        %v493 = vshll.u32 %v492, 16
        %v494 = vadd.s32 %v493, %v491
        %vm495 = vcmp.eq.s32.totalorder %v298, %v479
        %vm496 = vcmp.eq.s32.totalorder %v298, %v494
        %v497 = vsel %vm495, -inf, %v453
        %v498 = vsel %vm496, -inf, %v454
        %v499 = vsel %vm299, %v497, -inf
        %500 = vmax.xlane.f32.xlu0 %v499
        %v501 = vpop.xlane.xlu0 %500
        %v502 = vsel %vm299, %v498, -inf
        %503 = vmax.xlane.f32.xlu0 %v502
        %v504 = vpop.xlane.xlu0 %503
        %vm505 = vcmp.eq.f32.partialorder %v497, %v501
        %vm506 = vcmp.eq.f32.partialorder %v498, %v504
        %v507 = vsel %vm505, %v298, 16
        %v508 = vsel %vm506, %v298, 16
        %v509 = vsel %vm299, %v507, 2147483647
        %v510 = vand.u32 %v509, 65535
        %v511 = vshra.s32 %v509, 16
        %v512 = vcvt.s32.f32 %v510
        %v513 = vcvt.s32.f32 %v511
        %514 = vmin.xlane.f32.xlu0 %v513
        %v515 = vpop.xlane.xlu0 %514
        %vm516 = vcmp.eq.f32.partialorder %v513, %v515
        %v517 = vsel %vm516, %v512, inf
        %518 = vmin.xlane.f32.xlu0 %v517
        %v519 = vpop.xlane.xlu0 %518
        %v520 = vcvt.f32.s32 %v519
        %v521 = vcvt.f32.s32 %v515
        %v522 = vshll.u32 %v521, 16
        %v523 = vadd.s32 %v522, %v520
        %v524 = vsel %vm299, %v508, 2147483647
        %v525 = vand.u32 %v524, 65535
        %v526 = vshra.s32 %v524, 16
        %v527 = vcvt.s32.f32 %v525
        %v528 = vcvt.s32.f32 %v526
        %529 = vmin.xlane.f32.xlu0 %v528
        %v530 = vpop.xlane.xlu0 %529
        %vm531 = vcmp.eq.f32.partialorder %v528, %v530
        %v532 = vsel %vm531, %v527, inf
        %533 = vmin.xlane.f32.xlu0 %v532
        %v534 = vpop.xlane.xlu0 %533
        %v535 = vcvt.f32.s32 %v534
        %v536 = vcvt.f32.s32 %v530
        %v537 = vshll.u32 %v536, 16
        %v538 = vadd.s32 %v537, %v535
        %v539 = vlaneseq
        %v540 = vshrl.u32 %v539, 7
        %v541 = vsub.s32 %v298, %v540
        %v542 = vrot.slane %v523, %v541
        %v543 = vlaneseq
        %v544 = vshrl.u32 %v543, 7
        %v545 = vsub.s32 %v344, %v544
        %v546 = vrot.slane %v538, %v545
        %v547 = vsel %vm349, %v546, %v542
        %548 = vst.msk [vmem:[%s174 + $0x2] sm:$0x1] %vm351, %v547
        %vm549 = vcmp.eq.s32.totalorder %v298, %v523
        %vm550 = vcmp.eq.s32.totalorder %v298, %v538
        %v551 = vsel %vm549, -inf, %v497
        %v552 = vsel %vm550, -inf, %v498
        %v553 = vsel %vm299, %v551, -inf
        %554 = vmax.xlane.f32.xlu0 %v553
        %v555 = vpop.xlane.xlu0 %554
        %v556 = vsel %vm299, %v552, -inf
        %557 = vmax.xlane.f32.xlu0 %v556
        %v558 = vpop.xlane.xlu0 %557
        %vm559 = vcmp.eq.f32.partialorder %v551, %v555
        %vm560 = vcmp.eq.f32.partialorder %v552, %v558
        %v561 = vsel %vm559, %v298, 16
        %v562 = vsel %vm560, %v298, 16
        %v563 = vsel %vm299, %v561, 2147483647
        %v564 = vand.u32 %v563, 65535
        %v565 = vshra.s32 %v563, 16
        %v566 = vcvt.s32.f32 %v564
        %v567 = vcvt.s32.f32 %v565
        %568 = vmin.xlane.f32.xlu0 %v567
        %v569 = vpop.xlane.xlu0 %568
        %vm570 = vcmp.eq.f32.partialorder %v567, %v569
        %v571 = vsel %vm570, %v566, inf
        %572 = vmin.xlane.f32.xlu0 %v571
        %v573 = vpop.xlane.xlu0 %572
        %v574 = vcvt.f32.s32 %v573
        %v575 = vcvt.f32.s32 %v569
        %v576 = vshll.u32 %v575, 16
        %v577 = vadd.s32 %v576, %v574
        %v578 = vsel %vm299, %v562, 2147483647
        %v579 = vand.u32 %v578, 65535
        %v580 = vshra.s32 %v578, 16
        %v581 = vcvt.s32.f32 %v579
        %v582 = vcvt.s32.f32 %v580
        %583 = vmin.xlane.f32.xlu0 %v582
        %v584 = vpop.xlane.xlu0 %583
        %vm585 = vcmp.eq.f32.partialorder %v582, %v584
        %v586 = vsel %vm585, %v581, inf
        %587 = vmin.xlane.f32.xlu0 %v586
        %v588 = vpop.xlane.xlu0 %587
        %v589 = vcvt.f32.s32 %v588
        %v590 = vcvt.f32.s32 %v584
        %v591 = vshll.u32 %v590, 16
        %v592 = vadd.s32 %v591, %v589
        %vm593 = vcmp.eq.s32.totalorder %v298, %v577
        %vm594 = vcmp.eq.s32.totalorder %v298, %v592
        %v595 = vsel %vm593, -inf, %v551
        %v596 = vsel %vm594, -inf, %v552
        %v597 = vsel %vm299, %v595, -inf
        %598 = vmax.xlane.f32.xlu0 %v597
        %v599 = vpop.xlane.xlu0 %598
        %v600 = vsel %vm299, %v596, -inf
        %601 = vmax.xlane.f32.xlu0 %v600
        %v602 = vpop.xlane.xlu0 %601
        %vm603 = vcmp.eq.f32.partialorder %v595, %v599
        %vm604 = vcmp.eq.f32.partialorder %v596, %v602
        %v605 = vsel %vm603, %v298, 16
        %v606 = vsel %vm604, %v298, 16
        %v607 = vsel %vm299, %v605, 2147483647
        %v608 = vand.u32 %v607, 65535
        %v609 = vshra.s32 %v607, 16
        %v610 = vcvt.s32.f32 %v608
        %v611 = vcvt.s32.f32 %v609
        %612 = vmin.xlane.f32.xlu0 %v611
        %v613 = vpop.xlane.xlu0 %612
        %vm614 = vcmp.eq.f32.partialorder %v611, %v613
        %v615 = vsel %vm614, %v610, inf
        %616 = vmin.xlane.f32.xlu0 %v615
        %v617 = vpop.xlane.xlu0 %616
        %v618 = vcvt.f32.s32 %v617
        %v619 = vcvt.f32.s32 %v613
        %v620 = vshll.u32 %v619, 16
        %v621 = vadd.s32 %v620, %v618
        %v622 = vsel %vm299, %v606, 2147483647
        %v623 = vand.u32 %v622, 65535
        %v624 = vshra.s32 %v622, 16
        %v625 = vcvt.s32.f32 %v623
        %v626 = vcvt.s32.f32 %v624
        %627 = vmin.xlane.f32.xlu0 %v626
        %v628 = vpop.xlane.xlu0 %627
        %vm629 = vcmp.eq.f32.partialorder %v626, %v628
        %v630 = vsel %vm629, %v625, inf
        %631 = vmin.xlane.f32.xlu0 %v630
        %v632 = vpop.xlane.xlu0 %631
        %v633 = vcvt.f32.s32 %v632
        %v634 = vcvt.f32.s32 %v628
        %v635 = vshll.u32 %v634, 16
        %v636 = vadd.s32 %v635, %v633
        %v637 = vlaneseq
        %v638 = vshrl.u32 %v637, 7
        %v639 = vsub.s32 %v298, %v638
        %v640 = vrot.slane %v621, %v639
        %v641 = vlaneseq
        %v642 = vshrl.u32 %v641, 7
        %v643 = vsub.s32 %v344, %v642
        %v644 = vrot.slane %v636, %v643
        %v645 = vsel %vm349, %v644, %v640
        %646 = vst.msk [vmem:[%s174 + $0x3] sm:$0x1] %vm351, %v645
        %s647 = sand.u32 %s92, 1
        %s648 = scalar_lea.sflag [#allocation3], %s647
        %s649 = sand.u32 %s92, 1
        %s650 = smul.addr %s649, 4
        %s651 = scalar_lea.vmem [#allocation2], %s650
        // Predicated region
        $region29: #{tpu_custom_call.1} parent=27 // pred_check
          %p652 = pneg %p102
        $region30: #{tpu_custom_call.1} parent=27 // pred_check_branch
          %654 = sbr.rel (%p652) target = $region32
        $region31: #{tpu_custom_call.1} parent=27 // pred_region
          %s656 = ssub.s32 64, 64
          %657 = vsyncadd %s648, %s656
          %s658 = sadd.s32 %s21, %s20
          %s659 = smul.addr %s658, 64
          %s660 = scalar_lea.hbm %s2, %s659
          %s662 = sshll.u32 %s651, 4
          %s663 = int_to_ptr.vmem [resolvable:$true] %s662
          %665 = dma.vmem_to_hbm [thread:$0]  %s663, 64, %s660, %s648
        $region32: #{tpu_custom_call.1} parent=27 // pred_fallthru
          _
      $region28: #{tpu_custom_call.1} parent=5 // pred_fallthru
        _
      %p666 = scmp.le.s32.totalorder 2, %s11
      // Predicated region
      $region33: #{tpu_custom_call.1} parent=5 // pred_check
        %p667 = pneg %p666
      $region34: #{tpu_custom_call.1} parent=5 // pred_check_branch
        %669 = sbr.rel (%p667) target = $region36
      $region35: #{tpu_custom_call.1} parent=5 // pred_region
        %s670 = ssub.s32 %s11, 2
        // Predicated region
        $region37: #{tpu_custom_call.1} parent=35 // pred_check
          %p671 = pneg %p108
        $region38: #{tpu_custom_call.1} parent=35 // pred_check_branch
          %673 = sbr.rel (%p671) target = $region40
        $region39: #{tpu_custom_call.1} parent=35 // pred_region
          %s674 = sand.u32 %s93, 1
          %s675 = scalar_lea.sflag [#allocation3], %s674
          %s676 = sand.u32 %s93, 1
          %s677 = smul.addr %s676, 4
          %s678 = scalar_lea.vmem [#allocation2], %s677
          %679 = dma.done %s675, 64
        $region40: #{tpu_custom_call.1} parent=35 // pred_fallthru
          _
      $region36: #{tpu_custom_call.1} parent=5 // pred_fallthru
        _
    $region6: #{tpu_custom_call.1} parent=1 // loop_footer
      %s15 = sadd.s32 1, %s11
    $region7: #{tpu_custom_call.1} parent=1 // loop_footer_branch
      %10 = sbr.rel target = $region3
    $region8: #{tpu_custom_call.1} parent=1 // loop_exit
      _
    %680 = vsyncpa [#allocation3], 1
    %s681 = scalar_lea.sflag [#allocation3], 1
    %682 = vsyncpa %s681, 1

</llo_original>
